<compile_context>
chip_gen: v5e
topology: v5e:2x2
jax: 0.10.0
libtpu: 0.0.40
codegen_flags: <defaults>
</compile_context>

<pallas_src>
import jax
import jax.numpy as jnp
import numpy as np
from jax import lax
from jax.experimental import pallas as pl
from jax.experimental.pallas import tpu as pltpu

# ---- model hyperparameters (consistent with Encoder.__init__) ----
BINFEATS, CONTFEATS = 5, 3
IN_SIZE = BINFEATS + CONTFEATS          # 8
D = 4                                   # latent dim d
H = 32                                  # hidden width h
NH = 3                                  # -> (nh - 1) = 2 layers in hqy / hqz
BATCH = 8
LANE = 128                              # TPU vreg lane width

# ---- compact packed weight-slab layout (single 128-lane tile) ----
W_COLS = LANE                           # 128
R_WX   = 0                              # rows 0:8   hqy_w0 @0:32 | hqz_w0x @32:64 | lt_w0 @64:68
R_H1   = 8                              # rows 8:40  hqy_w1 @0:32 | hqz_w1  @32:64
R_M0   = 40                             # rows 40:72 my0_w0 @0:32 | my1_w0 @32:64 | mz0_w0 @64:96 | mz1_w0 @96:128
R_HEAD = 72                             # rows 72:136 block-diag output heads
W_ROWS = R_HEAD + 2 * H                 # 136

# head-slab column offsets
C_ZL0, C_ZS0, C_ZL1, C_ZS1 = 0, D, 2 * D, 3 * D       # 0, 4, 8, 12
C_Y0, C_Y1 = 4 * D, 4 * D + 1                         # 16, 17

# ---- bias/row-vector slab rows ----
BR_X, BR_H1, BR_M0, BR_HEAD, BR_W0Y, BR_LT = range(6)
B_ROWS = 8                              # padded to a full sublane tile


def _elu(v):                                     # F.elu (clamped exp argument)
    return jnp.where(v > 0, v, jnp.exp(jnp.minimum(v, 0.0)) - 1.0)


def _sigmoid(v):                                 # torch.sigmoid
    return 1.0 / (1.0 + jnp.exp(-v))


def _softplus(v):                                # F.softplus (stable)
    return jnp.maximum(v, 0.0) + jnp.log1p(jnp.exp(-jnp.abs(v)))


def _dot(a, b):
    # bulk matmuls: default (single-pass) MXU precision, f32 accumulation
    return jnp.dot(a, b, preferred_element_type=jnp.float32)


def _dot_hi(a, b):
    # tiny lt path only: near-f32 so the Bernoulli threshold is stable
    return jnp.dot(a, b, precision=lax.Precision.HIGHEST,
                   preferred_element_type=jnp.float32)


# ------------------------------ kernel ------------------------------------
def encoder_kernel(x_ref, u_ref, eps_ref, w_ref, b_ref, out_ref):
    x   = x_ref[...]                                         # (B, 8)
    u   = u_ref[...]                                         # (B, 1)
    eps = eps_ref[...]                                       # (B, 1)

    # M1 (default precision): x @ [hqy_w0 | hqz_w0x]  -> (B, 64)
    h1 = _dot(x, w_ref[R_WX:R_WX + IN_SIZE, 0:2 * H]) + b_ref[BR_X:BR_X + 1, 0:2 * H]
    hy   = _elu(h1[:, 0:H])                                  # hqy layer 1         (B, 32)
    hz_x = h1[:, H:2 * H]                                    # x@hqz_w0x + hqz_b0  (B, 32)

    # lt hidden (HIGHEST, 8x8x4) + M2 on VPU/XLU: Bernoulli threshold in f32
    ht = _elu(_dot_hi(x, w_ref[R_WX:R_WX + IN_SIZE, 2 * H:2 * H + D])
              + b_ref[BR_X:BR_X + 1, 2 * H:2 * H + D])       # (B, 4)
    t_pre = jnp.sum(ht * b_ref[BR_LT:BR_LT + 1, 0:D], axis=-1, keepdims=True) \
            + b_ref[BR_LT:BR_LT + 1, D:D + 1]                # (B, 1)
    t = (u < _sigmoid(t_pre)).astype(jnp.float32)            # t ~ Bernoulli

    # M3: hqy second layer
    hy = _elu(_dot(hy, w_ref[R_H1:R_H1 + H, 0:H]) + b_ref[BR_H1:BR_H1 + 1, 0:H])

    # M4: fused mu_qy_t0 / mu_qy_t1 hidden layers: hy @ [my0_w0 | my1_w0]
    h_my = _elu(_dot(hy, w_ref[R_M0:R_M0 + H, 0:2 * H]) + b_ref[BR_M0:BR_M0 + 1, 0:2 * H])

    # M5: fused y heads (block-diag, 2 lanes): [y0 | y1]
    y01 = _dot(h_my, w_ref[R_HEAD:R_HEAD + 2 * H, C_Y0:C_Y1 + 1]) \
          + b_ref[BR_HEAD:BR_HEAD + 1, C_Y0:C_Y1 + 1]        # (B, 2)
    y0 = y01[:, 0:1]
    y1 = y01[:, 1:2]
    y = t * y1 + (1.0 - t) * y0 + eps                        # y ~ Normal(y_loc, 1)

    # hqz on cat((x, y), 1): x part precomputed (hz_x includes hqz_b0);
    # add the y column's contribution y * hqz_w0y, then activate.
    hz = _elu(hz_x + y * b_ref[BR_W0Y:BR_W0Y + 1, 0:H])      # (B, 32)
    # M6: hqz second layer
    hz = _elu(_dot(hz, w_ref[R_H1:R_H1 + H, H:2 * H]) + b_ref[BR_H1:BR_H1 + 1, H:2 * H])

    # M7: fused muq_t0 / muq_t1 hidden layers: hz @ [mz0_w0 | mz1_w0]
    h_z = _elu(_dot(hz, w_ref[R_M0:R_M0 + H, 2 * H:4 * H]) + b_ref[BR_M0:BR_M0 + 1, 2 * H:4 * H])

    # M8: fused [loc | scale] x {t0, t1} heads (block-diag, 16 lanes)
    z_out = _dot(h_z, w_ref[R_HEAD:R_HEAD + 2 * H, 0:4 * D]) \
            + b_ref[BR_HEAD:BR_HEAD + 1, 0:4 * D]            # (B, 16)
    q0 = z_out[:, 0:2 * D]                                   # [z_loc_t0 | pre-softplus scale_t0]
    q1 = z_out[:, 2 * D:4 * D]                               # [z_loc_t1 | pre-softplus scale_t1]
    is_scale = lax.broadcasted_iota(jnp.int32, q0.shape, 1) >= D
    a0 = jnp.where(is_scale, _softplus(q0) + 1e-8, q0)
    a1 = jnp.where(is_scale, _softplus(q1) + 1e-8, q1)
    out_ref[...] = t * a1 + (1.0 - t) * a0                   # (B, 8) = [z_loc | z_scale]


# ------------------------ wrapper-side packing -----------------------------
def pack_params(p):
    """Pack all 32 weight/bias tensors into two compact f32 slabs (done once)."""
    w = jnp.zeros((W_ROWS, W_COLS), jnp.float32)
    w = w.at[R_WX:R_WX + IN_SIZE, 0:H].set(p["hqy_w0"])
    w = w.at[R_WX:R_WX + IN_SIZE, H:2 * H].set(p["hqz_w0x"])
    w = w.at[R_WX:R_WX + IN_SIZE, 2 * H:2 * H + D].set(p["lt_w0"])
    w = w.at[R_H1:R_H1 + H, 0:H].set(p["hqy_w1"])
    w = w.at[R_H1:R_H1 + H, H:2 * H].set(p["hqz_w1"])
    w = w.at[R_M0:R_M0 + H, 0:H].set(p["my0_w0"])
    w = w.at[R_M0:R_M0 + H, H:2 * H].set(p["my1_w0"])
    w = w.at[R_M0:R_M0 + H, 2 * H:3 * H].set(p["mz0_w0"])
    w = w.at[R_M0:R_M0 + H, 3 * H:4 * H].set(p["mz1_w0"])
    # block-diagonal output heads (all within the first 18 lanes)
    w = w.at[R_HEAD:R_HEAD + H, C_ZL0:C_ZL0 + D].set(p["mz0_wl"])
    w = w.at[R_HEAD:R_HEAD + H, C_ZS0:C_ZS0 + D].set(p["mz0_ws"])
    w = w.at[R_HEAD + H:R_HEAD + 2 * H, C_ZL1:C_ZL1 + D].set(p["mz1_wl"])
    w = w.at[R_HEAD + H:R_HEAD + 2 * H, C_ZS1:C_ZS1 + D].set(p["mz1_ws"])
    w = w.at[R_HEAD:R_HEAD + H, C_Y0:C_Y0 + 1].set(p["my0_w1"])
    w = w.at[R_HEAD + H:R_HEAD + 2 * H, C_Y1:C_Y1 + 1].set(p["my1_w1"])

    b = jnp.zeros((B_ROWS, W_COLS), jnp.float32)
    b = b.at[BR_X, 0:H].set(p["hqy_b0"][0])
    b = b.at[BR_X, H:2 * H].set(p["hqz_b0"][0])
    b = b.at[BR_X, 2 * H:2 * H + D].set(p["lt_b0"][0])
    b = b.at[BR_H1, 0:H].set(p["hqy_b1"][0])
    b = b.at[BR_H1, H:2 * H].set(p["hqz_b1"][0])
    b = b.at[BR_M0, 0:H].set(p["my0_b0"][0])
    b = b.at[BR_M0, H:2 * H].set(p["my1_b0"][0])
    b = b.at[BR_M0, 2 * H:3 * H].set(p["mz0_b0"][0])
    b = b.at[BR_M0, 3 * H:4 * H].set(p["mz1_b0"][0])
    b = b.at[BR_HEAD, C_ZL0:C_ZL0 + D].set(p["mz0_bl"][0])
    b = b.at[BR_HEAD, C_ZS0:C_ZS0 + D].set(p["mz0_bs"][0])
    b = b.at[BR_HEAD, C_ZL1:C_ZL1 + D].set(p["mz1_bl"][0])
    b = b.at[BR_HEAD, C_ZS1:C_ZS1 + D].set(p["mz1_bs"][0])
    b = b.at[BR_HEAD, C_Y0:C_Y0 + 1].set(p["my0_b1"][0])
    b = b.at[BR_HEAD, C_Y1:C_Y1 + 1].set(p["my1_b1"][0])
    b = b.at[BR_W0Y, 0:H].set(p["hqz_w0y"][0])
    b = b.at[BR_LT, 0:D].set(p["lt_w1"][:, 0])               # lt_w1 as a row vector
    b = b.at[BR_LT, D].set(p["lt_b1"][0, 0])
    return w, b


def encoder_forward(x, u, eps, w_slab, b_slab, *, tile_m=None):
    B = x.shape[0]
    if tile_m is None:
        tile_m = min(256, ((B + 7) // 8) * 8)                # multiple of 8
    pad = (-B) % tile_m
    if pad:                                                  # no-op at B=8
        x = jnp.pad(x, ((0, pad), (0, 0)))
        u = jnp.pad(u, ((0, pad), (0, 0)))
        eps = jnp.pad(eps, ((0, pad), (0, 0)))
    bp = x.shape[0]
    grid = (bp // tile_m,)                                   # batch-parallel grid

    out = pl.pallas_call(
        encoder_kernel,
        out_shape=jax.ShapeDtypeStruct((bp, 2 * D), jnp.float32),
        grid=grid,
        in_specs=[
            pl.BlockSpec((tile_m, IN_SIZE), lambda i: (i, 0)),
            pl.BlockSpec((tile_m, 1), lambda i: (i, 0)),
            pl.BlockSpec((tile_m, 1), lambda i: (i, 0)),
            pl.BlockSpec((W_ROWS, W_COLS), lambda i: (0, 0)),   # resident weights
            pl.BlockSpec((B_ROWS, W_COLS), lambda i: (0, 0)),   # resident biases
        ],
        out_specs=pl.BlockSpec((tile_m, 2 * D), lambda i: (i, 0)),
        compiler_params=pltpu.CompilerParams(dimension_semantics=("parallel",)),
    )(x, u, eps, w_slab, b_slab)
    out = out[:B]
    return out[:, :D], out[:, D:]


# ------------------------ pure-JAX reference -------------------------------
def encoder_ref(x, u, eps, p):
    def lin(v, w, b, hi=False):
        return (_dot_hi if hi else _dot)(v, w) + b

    ht = _elu(lin(x, p["lt_w0"], p["lt_b0"], hi=True))
    t_logits = _sigmoid(lin(ht, p["lt_w1"], p["lt_b1"], hi=True))
    t = (u < t_logits).astype(jnp.float32)
    hy = _elu(lin(x, p["hqy_w0"], p["hqy_b0"]))
    hy = _elu(lin(hy, p["hqy_w1"], p["hqy_b1"]))
    y0 = lin(_elu(lin(hy, p["my0_w0"], p["my0_b0"])), p["my0_w1"], p["my0_b1"])
    y1 = lin(_elu(lin(hy, p["my1_w0"], p["my1_b0"])), p["my1_w1"], p["my1_b1"])
    y = t * y1 + (1.0 - t) * y0 + eps
    xy = jnp.concatenate([x, y], axis=1)
    w0 = jnp.concatenate([p["hqz_w0x"], p["hqz_w0y"]], axis=0)
    hz = _elu(lin(xy, w0, p["hqz_b0"]))
    hz = _elu(lin(hz, p["hqz_w1"], p["hqz_b1"]))
    h0 = _elu(lin(hz, p["mz0_w0"], p["mz0_b0"]))
    zloc0 = lin(h0, p["mz0_wl"], p["mz0_bl"])
    zscale0 = _softplus(lin(h0, p["mz0_ws"], p["mz0_bs"])) + 1e-8
    h1 = _elu(lin(hz, p["mz1_w0"], p["mz1_b0"]))
    zloc1 = lin(h1, p["mz1_wl"], p["mz1_bl"])
    zscale1 = _softplus(lin(h1, p["mz1_ws"], p["mz1_bs"])) + 1e-8
    return t * zloc1 + (1.0 - t) * zloc0, t * zscale1 + (1.0 - t) * zscale0


# ------------------------ deterministic init -------------------------------
def init_params(key):
    def linear(k, fan_in, fan_out):
        kw, kb = jax.random.split(k)
        bound = 1.0 / np.sqrt(fan_in)
        w = jax.random.uniform(kw, (fan_in, fan_out), jnp.float32, -bound, bound)
        b = jax.random.uniform(kb, (1, fan_out), jnp.float32, -bound, bound)
        return w, b

    keys = jax.random.split(key, 16)
    p = {}
    p["lt_w0"], p["lt_b0"] = linear(keys[0], IN_SIZE, D)
    p["lt_w1"], p["lt_b1"] = linear(keys[1], D, 1)
    p["hqy_w0"], p["hqy_b0"] = linear(keys[2], IN_SIZE, H)
    p["hqy_w1"], p["hqy_b1"] = linear(keys[3], H, H)
    p["my0_w0"], p["my0_b0"] = linear(keys[4], H, H)
    p["my0_w1"], p["my0_b1"] = linear(keys[5], H, 1)
    p["my1_w0"], p["my1_b0"] = linear(keys[6], H, H)
    p["my1_w1"], p["my1_b1"] = linear(keys[7], H, 1)
    w0, p["hqz_b0"] = linear(keys[8], IN_SIZE + 1, H)     # Linear(in2_size, h)
    p["hqz_w0x"], p["hqz_w0y"] = w0[:IN_SIZE], w0[IN_SIZE:]
    p["hqz_w1"], p["hqz_b1"] = linear(keys[9], H, H)
    p["mz0_w0"], p["mz0_b0"] = linear(keys[10], H, H)
    p["mz0_wl"], p["mz0_bl"] = linear(keys[11], H, D)
    p["mz0_ws"], p["mz0_bs"] = linear(keys[12], H, D)
    p["mz1_w0"], p["mz1_b0"] = linear(keys[13], H, H)
    p["mz1_wl"], p["mz1_bl"] = linear(keys[14], H, D)
    p["mz1_ws"], p["mz1_bs"] = linear(keys[15], H, D)
    return p


if __name__ == "__main__":
    key = jax.random.PRNGKey(0)
    kbin, kcont, ku, keps, kp = jax.random.split(key, 5)

    # x = [binary features | continuous features], shape (BATCH, IN_SIZE)
    x_bin = (jax.random.uniform(kbin, (BATCH, BINFEATS)) < 0.5).astype(jnp.float32)
    x_cont = jax.random.normal(kcont, (BATCH, CONTFEATS), jnp.float32)
    x = jnp.concatenate([x_bin, x_cont], axis=1)

    # randomness for the two pyro.sample sites
    u = jax.random.uniform(ku, (BATCH, 1), jnp.float32)      # for Bernoulli t
    eps = jax.random.normal(keps, (BATCH, 1), jnp.float32)   # for Normal y

    params = init_params(kp)
    w_slab, b_slab = pack_params(params)                     # packed once

    z_loc, z_scale = jax.block_until_ready(
        encoder_forward(x, u, eps, w_slab, b_slab))

    ref_loc, ref_scale = encoder_ref(x, u, eps, params)
    # tolerance covers single-pass MXU (kernel) vs XLA default-precision dots
    # (reference) differences on the continuous path; the discrete Bernoulli
    # decision is taken at near-f32 precision in both.
    np.testing.assert_allclose(np.asarray(z_loc), np.asarray(ref_loc),
                               rtol=2e-2, atol=2e-2)
    np.testing.assert_allclose(np.asarray(z_scale), np.asarray(ref_scale),
                               rtol=2e-2, atol=2e-2)

    print("KERNEL_OK")
</pallas_src>

<mosaic_0001>
module attributes {stable_mosaic.version = 11 : i64} {
  func.func @encoder_kernel(%arg0: i32, %arg1: memref<8x8xf32, #tpu.memory_space<vmem>>, %arg2: memref<8x1xf32, #tpu.memory_space<vmem>>, %arg3: memref<8x1xf32, #tpu.memory_space<vmem>>, %arg4: memref<136x128xf32, #tpu.memory_space<vmem>>, %arg5: memref<8x128xf32, #tpu.memory_space<vmem>>, %arg6: memref<8x8xf32, #tpu.memory_space<vmem>>) attributes {dimension_semantics = [#tpu.dimension_semantics<parallel>], iteration_bounds = array<i64: 1>, scalar_prefetch = 0 : i64, scratch_operands = 0 : i64, tpu.core_type = #tpu.core_type<tc>, window_params = [{transform_indices = @transform_0, window_bounds = array<i64: 8, 8>}, {transform_indices = @transform_1, window_bounds = array<i64: 8, 1>}, {transform_indices = @transform_2, window_bounds = array<i64: 8, 1>}, {pipeline_mode = #tpu.pipeline_mode<synchronous>, transform_indices = @transform_3, window_bounds = array<i64: 136, 128>}, {pipeline_mode = #tpu.pipeline_mode<synchronous>, transform_indices = @transform_4, window_bounds = array<i64: 8, 128>}, {transform_indices = @transform_5, window_bounds = array<i64: 8, 8>}]} {
    %c0 = arith.constant 0 : index
    %c0_0 = arith.constant 0 : index
    %0 = vector.load %arg1[%c0, %c0_0] : memref<8x8xf32, #tpu.memory_space<vmem>>, vector<8x8xf32>
    %c0_1 = arith.constant 0 : index
    %c0_2 = arith.constant 0 : index
    %1 = vector.load %arg2[%c0_1, %c0_2] : memref<8x1xf32, #tpu.memory_space<vmem>>, vector<8x1xf32>
    %c0_3 = arith.constant 0 : index
    %c0_4 = arith.constant 0 : index
    %2 = vector.load %arg3[%c0_3, %c0_4] : memref<8x1xf32, #tpu.memory_space<vmem>>, vector<8x1xf32>
    %c0_5 = arith.constant 0 : index
    %c0_6 = arith.constant 0 : index
    %3 = vector.load %arg4[%c0_5, %c0_6] : memref<136x128xf32, #tpu.memory_space<vmem>>, vector<8x64xf32>
    %cst = arith.constant dense<0.000000e+00> : vector<8x64xf32>
    %4 = tpu.matmul %0, %3, %cst {dimension_numbers = #tpu.dot_dimension_numbers<[1], [0], [0], [1], [0, 0, 1, 1], [], []>} : vector<8x8xf32>, vector<8x64xf32>, vector<8x64xf32> -> vector<8x64xf32>
    %c0_7 = arith.constant 0 : index
    %c0_8 = arith.constant 0 : index
    %5 = vector.load %arg5[%c0_7, %c0_8] : memref<8x128xf32, #tpu.memory_space<vmem>>, vector<1x64xf32>
    %6 = vector.broadcast %5 : vector<1x64xf32> to vector<8x64xf32>
    %7 = arith.addf %4, %6 : vector<8x64xf32>
    %8 = vector.extract_strided_slice %7 {offsets = [0, 0], sizes = [8, 32], strides = [1, 1]} : vector<8x64xf32> to vector<8x32xf32>
    %cst_9 = arith.constant 0.000000e+00 : f32
    %9 = vector.broadcast %cst_9 : f32 to vector<8x32xf32>
    %10 = arith.cmpf ogt, %8, %9 : vector<8x32xf32>
    %cst_10 = arith.constant 0.000000e+00 : f32
    %11 = vector.broadcast %cst_10 : f32 to vector<8x32xf32>
    %12 = arith.minimumf %8, %11 : vector<8x32xf32>
    %13 = math.exp %12 : vector<8x32xf32>
    %cst_11 = arith.constant 1.000000e+00 : f32
    %14 = vector.broadcast %cst_11 : f32 to vector<8x32xf32>
    %15 = arith.subf %13, %14 : vector<8x32xf32>
    %16 = arith.select %10, %8, %15 : vector<8x32xi1>, vector<8x32xf32>
    %17 = vector.extract_strided_slice %7 {offsets = [0, 32], sizes = [8, 32], strides = [1, 1]} : vector<8x64xf32> to vector<8x32xf32>
    %c0_12 = arith.constant 0 : index
    %c64 = arith.constant 64 : index
    %18 = vector.load %arg4[%c0_12, %c64] : memref<136x128xf32, #tpu.memory_space<vmem>>, vector<8x4xf32>
    %cst_13 = arith.constant dense<0.000000e+00> : vector<8x4xf32>
    %19 = tpu.matmul %0, %18, %cst_13 {dimension_numbers = #tpu.dot_dimension_numbers<[1], [0], [0], [1], [0, 0, 1, 1], [], []>, precision = #tpu.contract_precision<fp32>} : vector<8x8xf32>, vector<8x4xf32>, vector<8x4xf32> -> vector<8x4xf32>
    %c0_14 = arith.constant 0 : index
    %c64_15 = arith.constant 64 : index
    %20 = vector.load %arg5[%c0_14, %c64_15] : memref<8x128xf32, #tpu.memory_space<vmem>>, vector<1x4xf32>
    %21 = vector.broadcast %20 : vector<1x4xf32> to vector<8x4xf32>
    %22 = arith.addf %19, %21 : vector<8x4xf32>
    %cst_16 = arith.constant 0.000000e+00 : f32
    %23 = vector.broadcast %cst_16 : f32 to vector<8x4xf32>
    %24 = arith.cmpf ogt, %22, %23 : vector<8x4xf32>
    %cst_17 = arith.constant 0.000000e+00 : f32
    %25 = vector.broadcast %cst_17 : f32 to vector<8x4xf32>
    %26 = arith.minimumf %22, %25 : vector<8x4xf32>
    %27 = math.exp %26 : vector<8x4xf32>
    %cst_18 = arith.constant 1.000000e+00 : f32
    %28 = vector.broadcast %cst_18 : f32 to vector<8x4xf32>
    %29 = arith.subf %27, %28 : vector<8x4xf32>
    %30 = arith.select %24, %22, %29 : vector<8x4xi1>, vector<8x4xf32>
    %c5 = arith.constant 5 : index
    %c0_19 = arith.constant 0 : index
    %31 = vector.load %arg5[%c5, %c0_19] : memref<8x128xf32, #tpu.memory_space<vmem>>, vector<1x4xf32>
    %32 = vector.broadcast %31 : vector<1x4xf32> to vector<8x4xf32>
    %33 = arith.mulf %30, %32 : vector<8x4xf32>
    %cst_20 = arith.constant dense<0.000000e+00> : vector<8xf32>
    %34 = vector.multi_reduction <add>, %33, %cst_20 [1] : vector<8x4xf32> to vector<8xf32>
    %35 = vector.shape_cast %34 : vector<8xf32> to vector<8x1xf32>
    %c5_21 = arith.constant 5 : index
    %c4 = arith.constant 4 : index
    %36 = vector.load %arg5[%c5_21, %c4] : memref<8x128xf32, #tpu.memory_space<vmem>>, vector<1x1xf32>
    %37 = vector.broadcast %36 : vector<1x1xf32> to vector<8x1xf32>
    %38 = arith.addf %35, %37 : vector<8x1xf32>
    %cst_22 = arith.constant 0.000000e+00 : f32
    %39 = vector.broadcast %cst_22 : f32 to vector<8x1xf32>
    %40 = arith.subf %39, %38 : vector<8x1xf32>
    %41 = math.exp %40 : vector<8x1xf32>
    %cst_23 = arith.constant 1.000000e+00 : f32
    %42 = vector.broadcast %cst_23 : f32 to vector<8x1xf32>
    %43 = arith.addf %42, %41 : vector<8x1xf32>
    %cst_24 = arith.constant 1.000000e+00 : f32
    %44 = vector.broadcast %cst_24 : f32 to vector<8x1xf32>
    %45 = arith.divf %44, %43 : vector<8x1xf32>
    %46 = arith.cmpf olt, %1, %45 : vector<8x1xf32>
    %47 = arith.extui %46 : vector<8x1xi1> to vector<8x1xi32>
    %48 = arith.sitofp %47 : vector<8x1xi32> to vector<8x1xf32>
    %c8 = arith.constant 8 : index
    %c0_25 = arith.constant 0 : index
    %49 = vector.load %arg4[%c8, %c0_25] : memref<136x128xf32, #tpu.memory_space<vmem>>, vector<32x32xf32>
    %cst_26 = arith.constant dense<0.000000e+00> : vector<8x32xf32>
    %50 = tpu.matmul %16, %49, %cst_26 {dimension_numbers = #tpu.dot_dimension_numbers<[1], [0], [0], [1], [0, 0, 1, 1], [], []>} : vector<8x32xf32>, vector<32x32xf32>, vector<8x32xf32> -> vector<8x32xf32>
    %c1 = arith.constant 1 : index
    %c0_27 = arith.constant 0 : index
    %51 = vector.load %arg5[%c1, %c0_27] : memref<8x128xf32, #tpu.memory_space<vmem>>, vector<1x32xf32>
    %52 = vector.broadcast %51 : vector<1x32xf32> to vector<8x32xf32>
    %53 = arith.addf %50, %52 : vector<8x32xf32>
    %cst_28 = arith.constant 0.000000e+00 : f32
    %54 = vector.broadcast %cst_28 : f32 to vector<8x32xf32>
    %55 = arith.cmpf ogt, %53, %54 : vector<8x32xf32>
    %cst_29 = arith.constant 0.000000e+00 : f32
    %56 = vector.broadcast %cst_29 : f32 to vector<8x32xf32>
    %57 = arith.minimumf %53, %56 : vector<8x32xf32>
    %58 = math.exp %57 : vector<8x32xf32>
    %cst_30 = arith.constant 1.000000e+00 : f32
    %59 = vector.broadcast %cst_30 : f32 to vector<8x32xf32>
    %60 = arith.subf %58, %59 : vector<8x32xf32>
    %61 = arith.select %55, %53, %60 : vector<8x32xi1>, vector<8x32xf32>
    %c40 = arith.constant 40 : index
    %c0_31 = arith.constant 0 : index
    %62 = vector.load %arg4[%c40, %c0_31] : memref<136x128xf32, #tpu.memory_space<vmem>>, vector<32x64xf32>
    %cst_32 = arith.constant dense<0.000000e+00> : vector<8x64xf32>
    %63 = tpu.matmul %61, %62, %cst_32 {dimension_numbers = #tpu.dot_dimension_numbers<[1], [0], [0], [1], [0, 0, 1, 1], [], []>} : vector<8x32xf32>, vector<32x64xf32>, vector<8x64xf32> -> vector<8x64xf32>
    %c2 = arith.constant 2 : index
    %c0_33 = arith.constant 0 : index
    %64 = vector.load %arg5[%c2, %c0_33] : memref<8x128xf32, #tpu.memory_space<vmem>>, vector<1x64xf32>
    %65 = vector.broadcast %64 : vector<1x64xf32> to vector<8x64xf32>
    %66 = arith.addf %63, %65 : vector<8x64xf32>
    %cst_34 = arith.constant 0.000000e+00 : f32
    %67 = vector.broadcast %cst_34 : f32 to vector<8x64xf32>
    %68 = arith.cmpf ogt, %66, %67 : vector<8x64xf32>
    %cst_35 = arith.constant 0.000000e+00 : f32
    %69 = vector.broadcast %cst_35 : f32 to vector<8x64xf32>
    %70 = arith.minimumf %66, %69 : vector<8x64xf32>
    %71 = math.exp %70 : vector<8x64xf32>
    %cst_36 = arith.constant 1.000000e+00 : f32
    %72 = vector.broadcast %cst_36 : f32 to vector<8x64xf32>
    %73 = arith.subf %71, %72 : vector<8x64xf32>
    %74 = arith.select %68, %66, %73 : vector<8x64xi1>, vector<8x64xf32>
    %c72 = arith.constant 72 : index
    %c16 = arith.constant 16 : index
    %75 = vector.load %arg4[%c72, %c16] : memref<136x128xf32, #tpu.memory_space<vmem>>, vector<64x2xf32>
    %cst_37 = arith.constant dense<0.000000e+00> : vector<8x2xf32>
    %76 = tpu.matmul %74, %75, %cst_37 {dimension_numbers = #tpu.dot_dimension_numbers<[1], [0], [0], [1], [0, 0, 1, 1], [], []>} : vector<8x64xf32>, vector<64x2xf32>, vector<8x2xf32> -> vector<8x2xf32>
    %c3 = arith.constant 3 : index
    %c16_38 = arith.constant 16 : index
    %77 = vector.load %arg5[%c3, %c16_38] : memref<8x128xf32, #tpu.memory_space<vmem>>, vector<1x2xf32>
    %78 = vector.broadcast %77 : vector<1x2xf32> to vector<8x2xf32>
    %79 = arith.addf %76, %78 : vector<8x2xf32>
    %80 = vector.extract_strided_slice %79 {offsets = [0, 0], sizes = [8, 1], strides = [1, 1]} : vector<8x2xf32> to vector<8x1xf32>
    %81 = vector.extract_strided_slice %79 {offsets = [0, 1], sizes = [8, 1], strides = [1, 1]} : vector<8x2xf32> to vector<8x1xf32>
    %82 = arith.mulf %48, %81 : vector<8x1xf32>
    %cst_39 = arith.constant 1.000000e+00 : f32
    %83 = vector.broadcast %cst_39 : f32 to vector<8x1xf32>
    %84 = arith.subf %83, %48 : vector<8x1xf32>
    %85 = arith.mulf %84, %80 : vector<8x1xf32>
    %86 = arith.addf %82, %85 : vector<8x1xf32>
    %87 = arith.addf %86, %2 : vector<8x1xf32>
    %c4_40 = arith.constant 4 : index
    %c0_41 = arith.constant 0 : index
    %88 = vector.load %arg5[%c4_40, %c0_41] : memref<8x128xf32, #tpu.memory_space<vmem>>, vector<1x32xf32>
    %89 = vector.broadcast %87 : vector<8x1xf32> to vector<8x32xf32>
    %90 = vector.broadcast %88 : vector<1x32xf32> to vector<8x32xf32>
    %91 = arith.mulf %89, %90 : vector<8x32xf32>
    %92 = arith.addf %17, %91 : vector<8x32xf32>
    %cst_42 = arith.constant 0.000000e+00 : f32
    %93 = vector.broadcast %cst_42 : f32 to vector<8x32xf32>
    %94 = arith.cmpf ogt, %92, %93 : vector<8x32xf32>
    %cst_43 = arith.constant 0.000000e+00 : f32
    %95 = vector.broadcast %cst_43 : f32 to vector<8x32xf32>
    %96 = arith.minimumf %92, %95 : vector<8x32xf32>
    %97 = math.exp %96 : vector<8x32xf32>
    %cst_44 = arith.constant 1.000000e+00 : f32
    %98 = vector.broadcast %cst_44 : f32 to vector<8x32xf32>
    %99 = arith.subf %97, %98 : vector<8x32xf32>
    %100 = arith.select %94, %92, %99 : vector<8x32xi1>, vector<8x32xf32>
    %c8_45 = arith.constant 8 : index
    %c32 = arith.constant 32 : index
    %101 = vector.load %arg4[%c8_45, %c32] : memref<136x128xf32, #tpu.memory_space<vmem>>, vector<32x32xf32>
    %cst_46 = arith.constant dense<0.000000e+00> : vector<8x32xf32>
    %102 = tpu.matmul %100, %101, %cst_46 {dimension_numbers = #tpu.dot_dimension_numbers<[1], [0], [0], [1], [0, 0, 1, 1], [], []>} : vector<8x32xf32>, vector<32x32xf32>, vector<8x32xf32> -> vector<8x32xf32>
    %c1_47 = arith.constant 1 : index
    %c32_48 = arith.constant 32 : index
    %103 = vector.load %arg5[%c1_47, %c32_48] : memref<8x128xf32, #tpu.memory_space<vmem>>, vector<1x32xf32>
    %104 = vector.broadcast %103 : vector<1x32xf32> to vector<8x32xf32>
    %105 = arith.addf %102, %104 : vector<8x32xf32>
    %cst_49 = arith.constant 0.000000e+00 : f32
    %106 = vector.broadcast %cst_49 : f32 to vector<8x32xf32>
    %107 = arith.cmpf ogt, %105, %106 : vector<8x32xf32>
    %cst_50 = arith.constant 0.000000e+00 : f32
    %108 = vector.broadcast %cst_50 : f32 to vector<8x32xf32>
    %109 = arith.minimumf %105, %108 : vector<8x32xf32>
    %110 = math.exp %109 : vector<8x32xf32>
    %cst_51 = arith.constant 1.000000e+00 : f32
    %111 = vector.broadcast %cst_51 : f32 to vector<8x32xf32>
    %112 = arith.subf %110, %111 : vector<8x32xf32>
    %113 = arith.select %107, %105, %112 : vector<8x32xi1>, vector<8x32xf32>
    %c40_52 = arith.constant 40 : index
    %c64_53 = arith.constant 64 : index
    %114 = vector.load %arg4[%c40_52, %c64_53] : memref<136x128xf32, #tpu.memory_space<vmem>>, vector<32x64xf32>
    %cst_54 = arith.constant dense<0.000000e+00> : vector<8x64xf32>
    %115 = tpu.matmul %113, %114, %cst_54 {dimension_numbers = #tpu.dot_dimension_numbers<[1], [0], [0], [1], [0, 0, 1, 1], [], []>} : vector<8x32xf32>, vector<32x64xf32>, vector<8x64xf32> -> vector<8x64xf32>
    %c2_55 = arith.constant 2 : index
    %c64_56 = arith.constant 64 : index
    %116 = vector.load %arg5[%c2_55, %c64_56] : memref<8x128xf32, #tpu.memory_space<vmem>>, vector<1x64xf32>
    %117 = vector.broadcast %116 : vector<1x64xf32> to vector<8x64xf32>
    %118 = arith.addf %115, %117 : vector<8x64xf32>
    %cst_57 = arith.constant 0.000000e+00 : f32
    %119 = vector.broadcast %cst_57 : f32 to vector<8x64xf32>
    %120 = arith.cmpf ogt, %118, %119 : vector<8x64xf32>
    %cst_58 = arith.constant 0.000000e+00 : f32
    %121 = vector.broadcast %cst_58 : f32 to vector<8x64xf32>
    %122 = arith.minimumf %118, %121 : vector<8x64xf32>
    %123 = math.exp %122 : vector<8x64xf32>
    %cst_59 = arith.constant 1.000000e+00 : f32
    %124 = vector.broadcast %cst_59 : f32 to vector<8x64xf32>
    %125 = arith.subf %123, %124 : vector<8x64xf32>
    %126 = arith.select %120, %118, %125 : vector<8x64xi1>, vector<8x64xf32>
    %c72_60 = arith.constant 72 : index
    %c0_61 = arith.constant 0 : index
    %127 = vector.load %arg4[%c72_60, %c0_61] : memref<136x128xf32, #tpu.memory_space<vmem>>, vector<64x16xf32>
    %cst_62 = arith.constant dense<0.000000e+00> : vector<8x16xf32>
    %128 = tpu.matmul %126, %127, %cst_62 {dimension_numbers = #tpu.dot_dimension_numbers<[1], [0], [0], [1], [0, 0, 1, 1], [], []>} : vector<8x64xf32>, vector<64x16xf32>, vector<8x16xf32> -> vector<8x16xf32>
    %c3_63 = arith.constant 3 : index
    %c0_64 = arith.constant 0 : index
    %129 = vector.load %arg5[%c3_63, %c0_64] : memref<8x128xf32, #tpu.memory_space<vmem>>, vector<1x16xf32>
    %130 = vector.broadcast %129 : vector<1x16xf32> to vector<8x16xf32>
    %131 = arith.addf %128, %130 : vector<8x16xf32>
    %132 = vector.extract_strided_slice %131 {offsets = [0, 0], sizes = [8, 8], strides = [1, 1]} : vector<8x16xf32> to vector<8x8xf32>
    %133 = vector.extract_strided_slice %131 {offsets = [0, 8], sizes = [8, 8], strides = [1, 1]} : vector<8x16xf32> to vector<8x8xf32>
    %134 = tpu.iota {dimensions = array<i32: 1>} : vector<8x8xi32>
    %c4_i32 = arith.constant 4 : i32
    %135 = vector.broadcast %c4_i32 : i32 to vector<8x8xi32>
    %136 = arith.cmpi sge, %134, %135 : vector<8x8xi32>
    %cst_65 = arith.constant 0.000000e+00 : f32
    %137 = vector.broadcast %cst_65 : f32 to vector<8x8xf32>
    %138 = arith.maximumf %132, %137 : vector<8x8xf32>
    %139 = math.absf %132 : vector<8x8xf32>
    %cst_66 = arith.constant 0.000000e+00 : f32
    %140 = vector.broadcast %cst_66 : f32 to vector<8x8xf32>
    %141 = arith.subf %140, %139 : vector<8x8xf32>
    %142 = math.exp %141 : vector<8x8xf32>
    %143 = math.log1p %142 : vector<8x8xf32>
    %144 = arith.addf %138, %143 : vector<8x8xf32>
    %cst_67 = arith.constant 9.99999993E-9 : f32
    %145 = vector.broadcast %cst_67 : f32 to vector<8x8xf32>
    %146 = arith.addf %144, %145 : vector<8x8xf32>
    %147 = arith.select %136, %146, %132 : vector<8x8xi1>, vector<8x8xf32>
    %cst_68 = arith.constant 0.000000e+00 : f32
    %148 = vector.broadcast %cst_68 : f32 to vector<8x8xf32>
    %149 = arith.maximumf %133, %148 : vector<8x8xf32>
    %150 = math.absf %133 : vector<8x8xf32>
    %cst_69 = arith.constant 0.000000e+00 : f32
    %151 = vector.broadcast %cst_69 : f32 to vector<8x8xf32>
    %152 = arith.subf %151, %150 : vector<8x8xf32>
    %153 = math.exp %152 : vector<8x8xf32>
    %154 = math.log1p %153 : vector<8x8xf32>
    %155 = arith.addf %149, %154 : vector<8x8xf32>
    %cst_70 = arith.constant 9.99999993E-9 : f32
    %156 = vector.broadcast %cst_70 : f32 to vector<8x8xf32>
    %157 = arith.addf %155, %156 : vector<8x8xf32>
    %158 = arith.select %136, %157, %133 : vector<8x8xi1>, vector<8x8xf32>
    %159 = vector.broadcast %48 : vector<8x1xf32> to vector<8x8xf32>
    %160 = arith.mulf %159, %158 : vector<8x8xf32>
    %cst_71 = arith.constant 1.000000e+00 : f32
    %161 = vector.broadcast %cst_71 : f32 to vector<8x1xf32>
    %162 = arith.subf %161, %48 : vector<8x1xf32>
    %163 = vector.broadcast %162 : vector<8x1xf32> to vector<8x8xf32>
    %164 = arith.mulf %163, %147 : vector<8x8xf32>
    %165 = arith.addf %160, %164 : vector<8x8xf32>
    %c0_72 = arith.constant 0 : index
    %c0_73 = arith.constant 0 : index
    %166 = vector.load %arg6[%c0_72, %c0_73] : memref<8x8xf32, #tpu.memory_space<vmem>>, vector<8x8xf32>
    tpu.vector_store %arg6[%c0_72, %c0_73], %165 {strides = array<i32>} : memref<8x8xf32, #tpu.memory_space<vmem>>, vector<8x8xf32>,
    return
  }
  func.func @transform_0(%arg0: i32) -> (i32, i32) {
    %c0_i32 = arith.constant 0 : i32
    %c0_i32_0 = arith.constant 0 : i32
    return %arg0, %c0_i32 : i32, i32
  }
  func.func @transform_1(%arg0: i32) -> (i32, i32) {
    %c0_i32 = arith.constant 0 : i32
    %c0_i32_0 = arith.constant 0 : i32
    return %arg0, %c0_i32 : i32, i32
  }
  func.func @transform_2(%arg0: i32) -> (i32, i32) {
    %c0_i32 = arith.constant 0 : i32
    %c0_i32_0 = arith.constant 0 : i32
    return %arg0, %c0_i32 : i32, i32
  }
  func.func @transform_3(%arg0: i32) -> (i32, i32) {
    %c0_i32 = arith.constant 0 : i32
    %c0_i32_0 = arith.constant 0 : i32
    %c0_i32_1 = arith.constant 0 : i32
    return %c0_i32, %c0_i32_0 : i32, i32
  }
  func.func @transform_4(%arg0: i32) -> (i32, i32) {
    %c0_i32 = arith.constant 0 : i32
    %c0_i32_0 = arith.constant 0 : i32
    %c0_i32_1 = arith.constant 0 : i32
    return %c0_i32, %c0_i32_0 : i32, i32
  }
  func.func @transform_5(%arg0: i32) -> (i32, i32) {
    %c0_i32 = arith.constant 0 : i32
    %c0_i32_0 = arith.constant 0 : i32
    return %arg0, %c0_i32 : i32, i32
  }
}

</mosaic_0001>

<llo_original>
// kernel: tpu_custom_call.1
$region0: #{tpu_custom_call.1}
  #allocation0 [shape = 'u32[]', space=smem, size = 0x4, offset = 0x4, fixed_abs, tag = 'smem constant byte address 0x4 - core index']
  #allocation1 [shape = 'u32[72,128]{1,0:T(1,128)}', space=vmem, size = 0x9000, scoped, tag = 'internal scratch']
  %s0 = inlined_call_operand.vmem [shape: f32[8,8], index: 0, kind: input, shape index: {}]
  %s1 = inlined_call_operand.vmem [shape: f32[8,1], index: 1, kind: input, shape index: {}]
  %s2 = inlined_call_operand.vmem [shape: f32[8,1], index: 2, kind: input, shape index: {}]
  %s3 = inlined_call_operand.hbm [shape: f32[136,128], index: 3, kind: input, shape index: {}]
  %s4 = inlined_call_operand.vmem [shape: f32[8,128], index: 4, kind: input, shape index: {}]
  %s5 = inlined_call_operand.hbm [shape: f32[8,8], index: 5, kind: output, shape index: {}]
  %s6 = sld [smem:[#allocation0]]
  $region34: #{tpu_custom_call.1} parent=0
    _
  %s8 = ssub.s32 1, %s6
  %s9 = scalar_select 0, %s8, %s6
  $region1: #{tpu_custom_call.1} parent=0
    #allocation2 [shape = 'u8[69632]{0}', space=vmem, size = 0x11000, scoped, tag = 'input window, operand 3, single buffered']
    #allocation3 [shape = 's32[1]{0}', space=sflag, size = 0x4, scoped, tag = 'scoped memory for tpu_custom_call.1']
    #allocation4 [shape = 's32[1]{0}', space=sflag, size = 0x4, scoped, tag = 'scoped memory for tpu_custom_call.1']
    #allocation5 [shape = 'u8[4096]{0}', space=vmem, size = 0x1000, scoped, tag = 'output window, operand 0, single buffered']
    %10 = vsyncpa [#allocation3], 0
    %11 = vsyncpa [#allocation4], 0
    // Predicated region
    $region2: #{tpu_custom_call.1} parent=1 // pred_check
      _
    $region3: #{tpu_custom_call.1} parent=1 // pred_check_branch
      %13 = sbr.rel (0) target = $region5
    $region4: #{tpu_custom_call.1} parent=1 // pred_region
      _
    $region5: #{tpu_custom_call.1} parent=1 // pred_fallthru
      _
    // Predicated region
    $region6: #{tpu_custom_call.1} parent=1 // pred_check
      _
    $region7: #{tpu_custom_call.1} parent=1 // pred_check_branch
      %15 = sbr.rel (0) target = $region9
    $region8: #{tpu_custom_call.1} parent=1 // pred_region
      _
    $region9: #{tpu_custom_call.1} parent=1 // pred_fallthru
      _
    // Predicated region
    $region10: #{tpu_custom_call.1} parent=1 // pred_check
      _
    $region11: #{tpu_custom_call.1} parent=1 // pred_check_branch
      %17 = sbr.rel (0) target = $region13
    $region12: #{tpu_custom_call.1} parent=1 // pred_region
      _
    $region13: #{tpu_custom_call.1} parent=1 // pred_fallthru
      _
    // Predicated region
    $region14: #{tpu_custom_call.1} parent=1 // pred_check
      _
    $region15: #{tpu_custom_call.1} parent=1 // pred_check_branch
      %19 = sbr.rel (0) target = $region17
    $region16: #{tpu_custom_call.1} parent=1 // pred_region
      %21 = vsyncadd [#allocation3], 0
      %s22 = sshll.u32 %s3, 4
      %s23 = int_to_ptr.hbm [resolvable:$true] %s22
      %s24 = sshll.u32 [#allocation2], 4
      %s25 = int_to_ptr.vmem [resolvable:$true] %s24
      %30 = dma.hbm_to_vmem [thread:$0]  %s23, 2176, %s25, [#allocation3], 128, 128, 8
    $region17: #{tpu_custom_call.1} parent=1 // pred_fallthru
      _
    // Predicated region
    $region18: #{tpu_custom_call.1} parent=1 // pred_check
      _
    $region19: #{tpu_custom_call.1} parent=1 // pred_check_branch
      %32 = sbr.rel (0) target = $region21
    $region20: #{tpu_custom_call.1} parent=1 // pred_region
      _
    $region21: #{tpu_custom_call.1} parent=1 // pred_fallthru
      _
    // Predicated region
    $region22: #{tpu_custom_call.1} parent=1 // pred_check
      _
    $region23: #{tpu_custom_call.1} parent=1 // pred_check_branch
      %34 = sbr.rel (0) target = $region25
    $region24: #{tpu_custom_call.1} parent=1 // pred_region
      %36 = dma.done [#allocation3], 2176
    $region25: #{tpu_custom_call.1} parent=1 // pred_fallthru
      _
    %v37 = vld [vmem:[%s0] sm:$0xff]
    %v38 = vld [vmem:[%s1] sm:$0xff]
    %v39 = vld [vmem:[%s2] sm:$0xff]
    %v40 = vld [vmem:[#allocation2] sm:$0xff]
    %v41 = vld [vmem:[%s4] sm:$0x1]
    %v42 = vperm.slane %v41, 0
    %vm43 = vcmask 64512
    %v45 = vsel %vm43, %v37, 0
    %47 = vmatpush.msra.mxu0 0.0
    %48 = vmatpush.msra.mxu0 0.0
    %49 = vmatpush.msra.mxu0 0.0
    %50 = vmatpush.msra.mxu0 0.0
    %51 = vmatpush.msra.mxu0 0.0
    %52 = vmatpush.msra.mxu0 0.0
    %53 = vmatpush.msra.mxu0 0.0
    %54 = vmatpush.msra.mxu0 0.0
    %55 = vmatpush.msra.mxu0 0.0
    %56 = vmatpush.msra.mxu0 0.0
    %57 = vmatpush.msra.mxu0 0.0
    %58 = vmatpush.msra.mxu0 0.0
    %59 = vmatpush.msra.mxu0 0.0
    %60 = vmatpush.msra.mxu0 0.0
    %61 = vmatpush.msra.mxu0 0.0
    %62 = vmatpush.msra.mxu0 %v40
    %63 = vmatmul.f32.gmra.mxu0 %v45
    %v64 = vpop.f32.mrf.mxu0
    %v65 = vadd.f32 %v42, %v64
    %66 = vdwg.mxu0
    %vm67 = vcmp.gt.f32.partialorder %v65, 0.0
    %v68 = vmin.f32 %v65, 0.0
    %v69 = vmul.f32 %v68, 1.442695
    %v70 = vpow.pop %v69
    %v71 = vsub.f32 %v70, 1.0
    %v72 = vsel %vm67, %v65, %v71
    %74 = vrot.lane.b32.xlu0 %v40, 64
    %v75 = vpop.permute.xlu0 %74
    %78 = vrot.lane.b32.xlu0 %v42, 64
    %v79 = vpop.permute.xlu0 %78
    %81 = vmatpush.msra.mxu0 0.0
    %82 = vmatpush.msra.mxu0 0.0
    %83 = vmatpush.msra.mxu0 0.0
    %84 = vmatpush.msra.mxu0 0.0
    %85 = vmatpush.msra.mxu0 0.0
    %86 = vmatpush.msra.mxu0 0.0
    %87 = vmatpush.msra.mxu0 0.0
    %88 = vmatpush.msra.mxu0 0.0
    %89 = vmatpush.msra.mxu0 0.0
    %90 = vmatpush.msra.mxu0 0.0
    %91 = vmatpush.msra.mxu0 0.0
    %92 = vmatpush.msra.mxu0 0.0
    %93 = vmatpush.msra.mxu0 0.0
    %94 = vmatpush.msra.mxu0 0.0
    %95 = vmatpush.msra.mxu0 0.0
    %v96 = vand.u32 %v75, 4294901760
    %97 = vmatpush.msra.mxu0 %v96
    %v98 = vand.u32 %v45, 4294901760
    %v99 = vsub.f32 %v45, %v98
    %v100 = vand.u32 %v99, 4294901760
    %v101 = vsub.f32 %v99, %v100
    %v102 = vand.u32 %v101, 4294901760
    %103 = vmatmul.f32.gmra.mxu0 %v102
    %v104 = vpop.f32.mrf.mxu0
    %v105 = vadd.f32 %v79, %v104
    %106 = vdwg.mxu0
    %107 = vmatpush.msra.mxu0 0.0
    %108 = vmatpush.msra.mxu0 0.0
    %109 = vmatpush.msra.mxu0 0.0
    %110 = vmatpush.msra.mxu0 0.0
    %111 = vmatpush.msra.mxu0 0.0
    %112 = vmatpush.msra.mxu0 0.0
    %113 = vmatpush.msra.mxu0 0.0
    %114 = vmatpush.msra.mxu0 0.0
    %115 = vmatpush.msra.mxu0 0.0
    %116 = vmatpush.msra.mxu0 0.0
    %117 = vmatpush.msra.mxu0 0.0
    %118 = vmatpush.msra.mxu0 0.0
    %119 = vmatpush.msra.mxu0 0.0
    %120 = vmatpush.msra.mxu0 0.0
    %121 = vmatpush.msra.mxu0 0.0
    %v122 = vand.u32 %v75, 4294901760
    %v123 = vsub.f32 %v75, %v122
    %v124 = vand.u32 %v123, 4294901760
    %v125 = vsub.f32 %v123, %v124
    %v126 = vand.u32 %v125, 4294901760
    %127 = vmatpush.msra.mxu0 %v126
    %v128 = vand.u32 %v45, 4294901760
    %129 = vmatmul.f32.gmra.mxu0 %v128
    %v130 = vpop.f32.mrf.mxu0
    %v131 = vadd.f32 %v105, %v130
    %132 = vdwg.mxu0
    %133 = vmatpush.msra.mxu0 0.0
    %134 = vmatpush.msra.mxu0 0.0
    %135 = vmatpush.msra.mxu0 0.0
    %136 = vmatpush.msra.mxu0 0.0
    %137 = vmatpush.msra.mxu0 0.0
    %138 = vmatpush.msra.mxu0 0.0
    %139 = vmatpush.msra.mxu0 0.0
    %140 = vmatpush.msra.mxu0 0.0
    %141 = vmatpush.msra.mxu0 0.0
    %142 = vmatpush.msra.mxu0 0.0
    %143 = vmatpush.msra.mxu0 0.0
    %144 = vmatpush.msra.mxu0 0.0
    %145 = vmatpush.msra.mxu0 0.0
    %146 = vmatpush.msra.mxu0 0.0
    %147 = vmatpush.msra.mxu0 0.0
    %v148 = vand.u32 %v75, 4294901760
    %v149 = vsub.f32 %v75, %v148
    %150 = vmatpush.msra.mxu0 %v149
    %v151 = vand.u32 %v45, 4294901760
    %v152 = vsub.f32 %v45, %v151
    %153 = vmatmul.f32.gmra.mxu0 %v152
    %v154 = vpop.f32.mrf.mxu0
    %v155 = vadd.f32 %v131, %v154
    %156 = vdwg.mxu0
    %157 = vmatpush.msra.mxu0 0.0
    %158 = vmatpush.msra.mxu0 0.0
    %159 = vmatpush.msra.mxu0 0.0
    %160 = vmatpush.msra.mxu0 0.0
    %161 = vmatpush.msra.mxu0 0.0
    %162 = vmatpush.msra.mxu0 0.0
    %163 = vmatpush.msra.mxu0 0.0
    %164 = vmatpush.msra.mxu0 0.0
    %165 = vmatpush.msra.mxu0 0.0
    %166 = vmatpush.msra.mxu0 0.0
    %167 = vmatpush.msra.mxu0 0.0
    %168 = vmatpush.msra.mxu0 0.0
    %169 = vmatpush.msra.mxu0 0.0
    %170 = vmatpush.msra.mxu0 0.0
    %171 = vmatpush.msra.mxu0 0.0
    %v172 = vand.u32 %v75, 4294901760
    %173 = vmatpush.msra.mxu0 %v172
    %v174 = vand.u32 %v45, 4294901760
    %v175 = vsub.f32 %v45, %v174
    %v176 = vand.u32 %v175, 4294901760
    %177 = vmatmul.f32.gmra.mxu0 %v176
    %v178 = vpop.f32.mrf.mxu0
    %v179 = vadd.f32 %v155, %v178
    %180 = vdwg.mxu0
    %181 = vmatpush.msra.mxu0 0.0
    %182 = vmatpush.msra.mxu0 0.0
    %183 = vmatpush.msra.mxu0 0.0
    %184 = vmatpush.msra.mxu0 0.0
    %185 = vmatpush.msra.mxu0 0.0
    %186 = vmatpush.msra.mxu0 0.0
    %187 = vmatpush.msra.mxu0 0.0
    %188 = vmatpush.msra.mxu0 0.0
    %189 = vmatpush.msra.mxu0 0.0
    %190 = vmatpush.msra.mxu0 0.0
    %191 = vmatpush.msra.mxu0 0.0
    %192 = vmatpush.msra.mxu0 0.0
    %193 = vmatpush.msra.mxu0 0.0
    %194 = vmatpush.msra.mxu0 0.0
    %195 = vmatpush.msra.mxu0 0.0
    %v196 = vand.u32 %v75, 4294901760
    %v197 = vsub.f32 %v75, %v196
    %v198 = vand.u32 %v197, 4294901760
    %199 = vmatpush.msra.mxu0 %v198
    %v200 = vand.u32 %v45, 4294901760
    %201 = vmatmul.f32.gmra.mxu0 %v200
    %v202 = vpop.f32.mrf.mxu0
    %v203 = vadd.f32 %v179, %v202
    %204 = vdwg.mxu0
    %205 = vmatpush.msra.mxu0 0.0
    %206 = vmatpush.msra.mxu0 0.0
    %207 = vmatpush.msra.mxu0 0.0
    %208 = vmatpush.msra.mxu0 0.0
    %209 = vmatpush.msra.mxu0 0.0
    %210 = vmatpush.msra.mxu0 0.0
    %211 = vmatpush.msra.mxu0 0.0
    %212 = vmatpush.msra.mxu0 0.0
    %213 = vmatpush.msra.mxu0 0.0
    %214 = vmatpush.msra.mxu0 0.0
    %215 = vmatpush.msra.mxu0 0.0
    %216 = vmatpush.msra.mxu0 0.0
    %217 = vmatpush.msra.mxu0 0.0
    %218 = vmatpush.msra.mxu0 0.0
    %219 = vmatpush.msra.mxu0 0.0
    %v220 = vand.u32 %v75, 4294901760
    %221 = vmatpush.msra.mxu0 %v220
    %v222 = vand.u32 %v45, 4294901760
    %223 = vmatmul.f32.gmra.mxu0 %v222
    %v224 = vpop.f32.mrf.mxu0
    %v225 = vadd.f32 %v203, %v224
    %226 = vdwg.mxu0
    %vm227 = vcmp.gt.f32.partialorder %v225, 0.0
    %v228 = vmin.f32 %v225, 0.0
    %v229 = vmul.f32 %v228, 1.442695
    %v230 = vpow.pop %v229
    %v231 = vsub.f32 %v230, 1.0
    %v232 = vsel %vm227, %v225, %v231
    %v233 = vld [vmem:[%s4 + $0x5] sm:$0x1]
    %v234 = vperm.slane %v233, 0
    %v235 = vmul.f32 %v232, %v234
    %vm236 = vcmask 31744
    %v237 = vsel %vm236, %v235, 0.0
    %238 = vadd.xlane.f32.xlu0 %v237
    %v239 = vpop.xlane.xlu0 %238
    %v240 = vadd.f32 %v239, %v234
    %v241 = vsub.f32 0.0, %v240
    %v242 = vmul.f32 %v241, 1.442695
    %v243 = vpow.pop %v242
    %v244 = vadd.f32 %v243, 1.0
    %v245 = vrcp.pop %v244
    %v246 = vmul.f32 %v244, %v245
    %v247 = vsub.f32 1.0, %v246
    %v248 = vmul.f32 %v245, %v247
    %v249 = vadd.f32 %v245, %v248
    %vm250 = vweird.f32 %v244
    %vm251 = vweird.f32 %v245
    %vm252 = vmor %vm250, %vm251
    %v253 = vsel %vm252, %v245, %v249
    %v254 = vand.u32 2147483647, %v244
    %vm255 = vcmp.eq.f32.partialorder %v254, 8.507059e+37
    %v256 = vand.u32 %v244, 2147483648
    %v257 = vor.u32 1.1754944e-38, %v256
    %v258 = vsel %vm255, %v257, %v253
    %v259 = vmul.f32 1.0, %v258
    %261 = vrot.lane.b32.xlu0 %v259, 124
    %v262 = vpop.permute.xlu0 %261
    %vm264 = vcmp.lt.f32.partialorder %v38, %v262
    %v265 = vsel %vm264, 1, 0
    %v266 = vcvt.s32.f32 %v265
    %v267 = vld [vmem:[#allocation2 + $0x8] sm:$0xff]
    %v268 = vld [vmem:[#allocation2 + $0x10] sm:$0xff]
    %v269 = vld [vmem:[#allocation2 + $0x18] sm:$0xff]
    %v270 = vld [vmem:[#allocation2 + $0x20] sm:$0xff]
    %v271 = vld [vmem:[%s4 + $0x1] sm:$0x1]
    %v272 = vperm.slane %v271, 0
    %vm273 = vcmask 261120
    %v275 = vsel %vm273, %v72, 0
    %277 = vmatpush.msra.mxu0 0.0
    %278 = vmatpush.msra.mxu0 0.0
    %279 = vmatpush.msra.mxu0 0.0
    %280 = vmatpush.msra.mxu0 0.0
    %281 = vmatpush.msra.mxu0 0.0
    %282 = vmatpush.msra.mxu0 0.0
    %283 = vmatpush.msra.mxu0 0.0
    %284 = vmatpush.msra.mxu0 0.0
    %285 = vmatpush.msra.mxu0 0.0
    %286 = vmatpush.msra.mxu0 0.0
    %287 = vmatpush.msra.mxu0 0.0
    %288 = vmatpush.msra.mxu0 0.0
    %289 = vmatpush.msra.mxu0 %v270
    %290 = vmatpush.msra.mxu0 %v269
    %291 = vmatpush.msra.mxu0 %v268
    %292 = vmatpush.msra.mxu0 %v267
    %293 = vmatmul.f32.gmra.mxu0 %v275
    %v294 = vpop.f32.mrf.mxu0
    %v295 = vadd.f32 %v272, %v294
    %296 = vdwg.mxu0
    %vm297 = vcmp.gt.f32.partialorder %v295, 0.0
    %v298 = vmin.f32 %v295, 0.0
    %v299 = vmul.f32 %v298, 1.442695
    %v300 = vpow.pop %v299
    %v301 = vsub.f32 %v300, 1.0
    %v302 = vsel %vm297, %v295, %v301
    %v303 = vld [vmem:[#allocation2 + $0x28] sm:$0xff]
    %v304 = vld [vmem:[#allocation2 + $0x30] sm:$0xff]
    %v305 = vld [vmem:[#allocation2 + $0x38] sm:$0xff]
    %v306 = vld [vmem:[#allocation2 + $0x40] sm:$0xff]
    %v307 = vld [vmem:[%s4 + $0x2] sm:$0x1]
    %v308 = vperm.slane %v307, 0
    %v310 = vsel %vm273, %v302, 0
    %312 = vmatpush.msra.mxu0 0.0
    %313 = vmatpush.msra.mxu0 0.0
    %314 = vmatpush.msra.mxu0 0.0
    %315 = vmatpush.msra.mxu0 0.0
    %316 = vmatpush.msra.mxu0 0.0
    %317 = vmatpush.msra.mxu0 0.0
    %318 = vmatpush.msra.mxu0 0.0
    %319 = vmatpush.msra.mxu0 0.0
    %320 = vmatpush.msra.mxu0 0.0
    %321 = vmatpush.msra.mxu0 0.0
    %322 = vmatpush.msra.mxu0 0.0
    %323 = vmatpush.msra.mxu0 0.0
    %324 = vmatpush.msra.mxu0 %v306
    %325 = vmatpush.msra.mxu0 %v305
    %326 = vmatpush.msra.mxu0 %v304
    %327 = vmatpush.msra.mxu0 %v303
    %328 = vmatmul.f32.gmra.mxu0 %v310
    %v329 = vpop.f32.mrf.mxu0
    %v330 = vadd.f32 %v308, %v329
    %331 = vdwg.mxu0
    %vm332 = vcmp.gt.f32.partialorder %v330, 0.0
    %v333 = vmin.f32 %v330, 0.0
    %v334 = vmul.f32 %v333, 1.442695
    %v335 = vpow.pop %v334
    %v336 = vsub.f32 %v335, 1.0
    %v337 = vsel %vm332, %v330, %v336
    %v338 = vld [vmem:[#allocation2 + $0x48] sm:$0xff]
    %v339 = vld [vmem:[#allocation2 + $0x50] sm:$0xff]
    %v340 = vld [vmem:[#allocation2 + $0x58] sm:$0xff]
    %v341 = vld [vmem:[#allocation2 + $0x60] sm:$0xff]
    %v342 = vld [vmem:[#allocation2 + $0x68] sm:$0xff]
    %v343 = vld [vmem:[#allocation2 + $0x70] sm:$0xff]
    %v344 = vld [vmem:[#allocation2 + $0x78] sm:$0xff]
    %v345 = vld [vmem:[#allocation2 + $0x80] sm:$0xff]
    %v346 = vld [vmem:[%s4 + $0x3] sm:$0x1]
    %v347 = vperm.slane %v346, 0
    %356 = vrot.lane.b32.xlu0 %v338, 112
    %v357 = vpop.permute.xlu0 %356
    %358 = vrot.lane.b32.xlu0 %v339, 112
    %v359 = vpop.permute.xlu0 %358
    %360 = vrot.lane.b32.xlu0 %v340, 112
    %v361 = vpop.permute.xlu0 %360
    %362 = vrot.lane.b32.xlu0 %v341, 112
    %v363 = vpop.permute.xlu0 %362
    %364 = vrot.lane.b32.xlu0 %v342, 112
    %v365 = vpop.permute.xlu0 %364
    %366 = vrot.lane.b32.xlu0 %v343, 112
    %v367 = vpop.permute.xlu0 %366
    %368 = vrot.lane.b32.xlu0 %v344, 112
    %v369 = vpop.permute.xlu0 %368
    %370 = vrot.lane.b32.xlu0 %v345, 112
    %v371 = vpop.permute.xlu0 %370
    %381 = vrot.lane.b32.xlu0 %v347, 112
    %v382 = vpop.permute.xlu0 %381
    %vm384 = vcmask 523264
    %v386 = vsel %vm384, %v337, 0
    %388 = vmatpush.msra.mxu0 0.0
    %389 = vmatpush.msra.mxu0 0.0
    %390 = vmatpush.msra.mxu0 0.0
    %391 = vmatpush.msra.mxu0 0.0
    %392 = vmatpush.msra.mxu0 0.0
    %393 = vmatpush.msra.mxu0 0.0
    %394 = vmatpush.msra.mxu0 0.0
    %395 = vmatpush.msra.mxu0 0.0
    %396 = vmatpush.msra.mxu0 %v371
    %397 = vmatpush.msra.mxu0 %v369
    %398 = vmatpush.msra.mxu0 %v367
    %399 = vmatpush.msra.mxu0 %v365
    %400 = vmatpush.msra.mxu0 %v363
    %401 = vmatpush.msra.mxu0 %v361
    %402 = vmatpush.msra.mxu0 %v359
    %403 = vmatpush.msra.mxu0 %v357
    %404 = vmatmul.f32.gmra.mxu0 %v386
    %v405 = vpop.f32.mrf.mxu0
    %v406 = vadd.f32 %v382, %v405
    %407 = vdwg.mxu0
    %409 = vrot.lane.b32.xlu0 %v406, 127
    %v410 = vpop.permute.xlu0 %409
    %v412 = vmul.f32 %v266, %v410
    %v413 = vsub.f32 1.0, %v266
    %v414 = vmul.f32 %v413, %v406
    %v415 = vadd.f32 %v412, %v414
    %v416 = vadd.f32 %v415, %v39
    %v417 = vld [vmem:[%s4 + $0x4] sm:$0x1]
    %419 = vset.pattern.permute.xlu0 0
    %420 = vperm.xlu0 %419, %v416
    %v421 = vpop.permute.xlu0 %420
    %v423 = vperm.slane %v417, 0
    %v424 = vmul.f32 %v421, %v423
    %426 = vrot.lane.b32.xlu0 %v424, 32
    %v427 = vpop.permute.xlu0 %426
    %v429 = vadd.f32 %v65, %v427
    %vm430 = vcmp.gt.f32.partialorder %v429, 0.0
    %v431 = vmin.f32 %v429, 0.0
    %v432 = vmul.f32 %v431, 1.442695
    %v433 = vpow.pop %v432
    %v434 = vsub.f32 %v433, 1.0
    %v435 = vsel %vm430, %v429, %v434
    %437 = vrot.lane.b32.xlu0 %v435, 96
    %v438 = vpop.permute.xlu0 %437
    %443 = vrot.lane.b32.xlu0 %v267, 96
    %v444 = vpop.permute.xlu0 %443
    %445 = vrot.lane.b32.xlu0 %v268, 96
    %v446 = vpop.permute.xlu0 %445
    %447 = vrot.lane.b32.xlu0 %v269, 96
    %v448 = vpop.permute.xlu0 %447
    %449 = vrot.lane.b32.xlu0 %v270, 96
    %v450 = vpop.permute.xlu0 %449
    %456 = vrot.lane.b32.xlu0 %v272, 96
    %v457 = vpop.permute.xlu0 %456
    %v459 = vsel %vm273, %v438, 0
    %461 = vmatpush.msra.mxu0 0.0
    %462 = vmatpush.msra.mxu0 0.0
    %463 = vmatpush.msra.mxu0 0.0
    %464 = vmatpush.msra.mxu0 0.0
    %465 = vmatpush.msra.mxu0 0.0
    %466 = vmatpush.msra.mxu0 0.0
    %467 = vmatpush.msra.mxu0 0.0
    %468 = vmatpush.msra.mxu0 0.0
    %469 = vmatpush.msra.mxu0 0.0
    %470 = vmatpush.msra.mxu0 0.0
    %471 = vmatpush.msra.mxu0 0.0
    %472 = vmatpush.msra.mxu0 0.0
    %473 = vmatpush.msra.mxu0 %v450
    %474 = vmatpush.msra.mxu0 %v448
    %475 = vmatpush.msra.mxu0 %v446
    %476 = vmatpush.msra.mxu0 %v444
    %477 = vmatmul.f32.gmra.mxu0 %v459
    %v478 = vpop.f32.mrf.mxu0
    %v479 = vadd.f32 %v457, %v478
    %480 = vdwg.mxu0
    %vm481 = vcmp.gt.f32.partialorder %v479, 0.0
    %v482 = vmin.f32 %v479, 0.0
    %v483 = vmul.f32 %v482, 1.442695
    %v484 = vpow.pop %v483
    %v485 = vsub.f32 %v484, 1.0
    %v486 = vsel %vm481, %v479, %v485
    %491 = vrot.lane.b32.xlu0 %v303, 64
    %v492 = vpop.permute.xlu0 %491
    %493 = vrot.lane.b32.xlu0 %v304, 64
    %v494 = vpop.permute.xlu0 %493
    %495 = vrot.lane.b32.xlu0 %v305, 64
    %v496 = vpop.permute.xlu0 %495
    %497 = vrot.lane.b32.xlu0 %v306, 64
    %v498 = vpop.permute.xlu0 %497
    %504 = vrot.lane.b32.xlu0 %v308, 64
    %v505 = vpop.permute.xlu0 %504
    %v508 = vsel %vm273, %v486, 0
    %510 = vmatpush.msra.mxu0 0.0
    %511 = vmatpush.msra.mxu0 0.0
    %512 = vmatpush.msra.mxu0 0.0
    %513 = vmatpush.msra.mxu0 0.0
    %514 = vmatpush.msra.mxu0 0.0
    %515 = vmatpush.msra.mxu0 0.0
    %516 = vmatpush.msra.mxu0 0.0
    %517 = vmatpush.msra.mxu0 0.0
    %518 = vmatpush.msra.mxu0 0.0
    %519 = vmatpush.msra.mxu0 0.0
    %520 = vmatpush.msra.mxu0 0.0
    %521 = vmatpush.msra.mxu0 0.0
    %522 = vmatpush.msra.mxu0 %v498
    %523 = vmatpush.msra.mxu0 %v496
    %524 = vmatpush.msra.mxu0 %v494
    %525 = vmatpush.msra.mxu0 %v492
    %526 = vmatmul.f32.gmra.mxu0 %v508
    %v527 = vpop.f32.mrf.mxu0
    %v528 = vadd.f32 %v505, %v527
    %529 = vdwg.mxu0
    %vm530 = vcmp.gt.f32.partialorder %v528, 0.0
    %v531 = vmin.f32 %v528, 0.0
    %v532 = vmul.f32 %v531, 1.442695
    %v533 = vpow.pop %v532
    %v534 = vsub.f32 %v533, 1.0
    %v535 = vsel %vm530, %v528, %v534
    %v537 = vsel %vm384, %v535, 0
    %539 = vmatpush.msra.mxu0 0.0
    %540 = vmatpush.msra.mxu0 0.0
    %541 = vmatpush.msra.mxu0 0.0
    %542 = vmatpush.msra.mxu0 0.0
    %543 = vmatpush.msra.mxu0 0.0
    %544 = vmatpush.msra.mxu0 0.0
    %545 = vmatpush.msra.mxu0 0.0
    %546 = vmatpush.msra.mxu0 0.0
    %547 = vmatpush.msra.mxu0 %v345
    %548 = vmatpush.msra.mxu0 %v344
    %549 = vmatpush.msra.mxu0 %v343
    %550 = vmatpush.msra.mxu0 %v342
    %551 = vmatpush.msra.mxu0 %v341
    %552 = vmatpush.msra.mxu0 %v340
    %553 = vmatpush.msra.mxu0 %v339
    %554 = vmatpush.msra.mxu0 %v338
    %555 = vmatmul.f32.gmra.mxu0 %v537
    %v556 = vpop.f32.mrf.mxu0
    %v557 = vadd.f32 %v347, %v556
    %558 = vdwg.mxu0
    %v559 = vlaneseq
    %v560 = vand.u32 %v559, 127
    %vm561 = vcmp.ge.s32.totalorder %v560, 4
    %v562 = vmax.f32 %v557, 0.0
    %v563 = vand.u32 2147483647, %v557
    %v564 = vsub.f32 0.0, %v563
    %v565 = vmul.f32 %v564, 1.442695
    %v566 = vpow.pop %v565
    %v567 = vadd.f32 %v566, 1.0
    %v568 = vlog2.pop %v567
    %v569 = vmul.f32 %v568, 0.6931472
    %v570 = vmul.f32 -0.5, %v566
    %v571 = vadd.f32 %v570, 1.0
    %v572 = vmul.f32 %v571, %v566
    %v573 = vand.u32 2147483647, %v566
    %vm574 = vcmp.lt.f32.partialorder %v573, 0.0004427343
    %v575 = vsel %vm574, %v572, %v569
    %v576 = vadd.f32 %v562, %v575
    %v577 = vadd.f32 %v576, 1e-08
    %v578 = vsel %vm561, %v577, %v557
    %580 = vrot.lane.b32.xlu0 %v577, 120
    %v581 = vpop.permute.xlu0 %580
    %584 = vrot.lane.b32.xlu0 %v557, 120
    %v585 = vpop.permute.xlu0 %584
    %v587 = vsel %vm561, %v581, %v585
    %589 = vset.pattern.permute.xlu0 0
    %590 = vperm.xlu0 %589, %v266
    %v591 = vpop.permute.xlu0 %590
    %v593 = vmul.f32 %v591, %v587
    %595 = vset.pattern.permute.xlu0 0
    %596 = vperm.xlu0 %595, %v413
    %v597 = vpop.permute.xlu0 %596
    %v599 = vmul.f32 %v597, %v578
    %v600 = vadd.f32 %v593, %v599
    %601 = vst.msk [vmem:[#allocation5] sm:$0xff] %vm43, %v600
    // Predicated region
    $region26: #{tpu_custom_call.1} parent=1 // pred_check
      _
    $region27: #{tpu_custom_call.1} parent=1 // pred_check_branch
      %603 = sbr.rel (0) target = $region29
    $region28: #{tpu_custom_call.1} parent=1 // pred_region
      %605 = vsyncadd [#allocation4], 0
      %s607 = sshll.u32 [#allocation5], 4
      %s608 = int_to_ptr.vmem [resolvable:$true] %s607
      %s609 = sshll.u32 %s5, 4
      %s610 = int_to_ptr.hbm [resolvable:$true] %s609
      %612 = dma.vmem_to_hbm [thread:$0]  %s608, 128, %s610, [#allocation4]
    $region29: #{tpu_custom_call.1} parent=1 // pred_fallthru
      _
    // Predicated region
    $region30: #{tpu_custom_call.1} parent=1 // pred_check
      _
    $region31: #{tpu_custom_call.1} parent=1 // pred_check_branch
      %614 = sbr.rel (0) target = $region33
    $region32: #{tpu_custom_call.1} parent=1 // pred_region
      %616 = dma.done [#allocation4], 128
    $region33: #{tpu_custom_call.1} parent=1 // pred_fallthru
      _
    %617 = vsyncpa [#allocation3], 1
    %618 = vsyncpa [#allocation4], 1

</llo_original>
